<compile_context>
chip_gen: v5e
topology: v5e:2x2
jax: 0.10.0
libtpu: 0.0.40
codegen_flags: <defaults>
</compile_context>

<pallas_src>
import functools

import jax
import jax.numpy as jnp
from jax import lax
from jax.experimental import pallas as pl
from jax.experimental.pallas import tpu as pltpu


def _foreach_row(n, body):
    """Run body(r) for r in [0, n).  Small n: plain Python unroll; larger n:
    rolled fori_loop with modest unroll so the bundle stream stays short."""
    if n <= 32:
        for r in range(n):
            body(r)
    else:
        def _body(r, carry):
            body(r)
            return carry
        lax.fori_loop(0, n, _body, 0, unroll=8)


# ---------------------------------------------------------------------------
# Primary kernel: persistent `target` resident in VMEM.
# ---------------------------------------------------------------------------
def _elr_resident_kernel(idx_ref, logits_ref, target_hbm, new_target_hbm,
                         elr_ref, tgt_vmem, row_buf, copy_sem,
                         *, beta, tile_b):
    i = pl.program_id(0)
    base = i * tile_b

    # Step 0: ONE bulk HBM->VMEM DMA of the whole target (bandwidth-trivial),
    # replacing the old 2*B tiny per-row HBM DMAs; also zero the accumulator.
    @pl.when(i == 0)
    def _():
        cp = pltpu.make_async_copy(target_hbm, tgt_vmem, copy_sem.at[0])
        cp.start()
        cp.wait()
        elr_ref[...] = jnp.zeros_like(elr_ref)

    # ---- Softmax over classes + clamp (all f32; compute is a few vregs) ----
    logits = logits_ref[...].astype(jnp.float32)                    # (tile_b, C)
    m = jnp.max(logits, axis=1, keepdims=True)
    e = jnp.exp(logits - m)
    inv_den = pl.reciprocal(jnp.sum(e, axis=1, keepdims=True), approx=True)
    y_pred = jnp.clip(e * inv_den, 1e-4, 1.0 - 1e-4)                # torch.clamp

    # Renormalisation feeding the persistent EMA state: EXACT divide (the
    # approximate EUP reciprocal would inject ~1e-3 drift every call).
    y_norm = y_pred / jnp.sum(y_pred, axis=1, keepdims=True)

    # ---- Gather touched rows from the resident target (in-VMEM slices) ----
    def gather_row(r):
        j = idx_ref[base + r]
        row_buf[pl.ds(r, 1), :] = tgt_vmem[pl.ds(j, 1), :].astype(jnp.float32)
    _foreach_row(tile_b, gather_row)

    # ---- Temporal ensembling: new = beta*old + (1-beta) * y_pred/sum ----
    new_t = beta * row_buf[...] + (1.0 - beta) * y_norm             # (tile_b, C)
    row_buf[...] = new_t

    # ---- Scatter updated rows back into the resident target ----
    # (Duplicate indices within the tile: last writer wins, matching PyTorch's
    # unordered scatter semantics.)
    def scatter_row(r):
        j = idx_ref[base + r]
        tgt_vmem[pl.ds(j, 1), :] = row_buf[pl.ds(r, 1), :].astype(tgt_vmem.dtype)
    _foreach_row(tile_b, scatter_row)

    # ---- ELR regularizer partial sum: sum(log(1 - <new_t, y_pred>)) ----
    dot = jnp.sum(new_t * y_pred, axis=1, keepdims=True)            # (tile_b, 1)
    # The y_pred clamp keeps 1 - dot >= ~1e-4; max() only guards the -inf corner.
    elr_ref[...] += jnp.sum(jnp.log(jnp.maximum(1.0 - dot, 1e-8)))

    # Last step: ONE bulk VMEM->HBM DMA back into the aliased target buffer.
    @pl.when(i == pl.num_programs(0) - 1)
    def _():
        cp = pltpu.make_async_copy(tgt_vmem, new_target_hbm, copy_sem.at[0])
        cp.start()
        cp.wait()


# ---------------------------------------------------------------------------
# Fallback kernel: per-row HBM gather/scatter, for targets too large for VMEM.
# (Not exercised by the small demo below.)
# ---------------------------------------------------------------------------
def _elr_rowdma_kernel(idx_ref, logits_ref, target_hbm, new_target_hbm,
                       elr_ref, tgt_buf, new_buf, sems, *, beta, tile_b):
    i = pl.program_id(0)
    base = i * tile_b

    # Hoist the SMEM index reads: one scalar load per row, reused by both the
    # gather and the scatter DMAs.
    rows = [idx_ref[base + r] for r in range(tile_b)]

    # Gather the touched rows; all copies share ONE DMA semaphore (aggregate
    # wait) instead of a (tile_b,) semaphore array.
    for r, j in enumerate(rows):
        pltpu.make_async_copy(target_hbm.at[pl.ds(j, 1)],
                              tgt_buf.at[pl.ds(r, 1)], sems.at[0]).start()
    for r, j in enumerate(rows):
        pltpu.make_async_copy(target_hbm.at[pl.ds(j, 1)],
                              tgt_buf.at[pl.ds(r, 1)], sems.at[0]).wait()

    logits = logits_ref[...].astype(jnp.float32)
    m = jnp.max(logits, axis=1, keepdims=True)
    e = jnp.exp(logits - m)
    y_pred = jnp.clip(
        e * pl.reciprocal(jnp.sum(e, axis=1, keepdims=True), approx=True),
        1e-4, 1.0 - 1e-4)
    y_norm = y_pred / jnp.sum(y_pred, axis=1, keepdims=True)        # exact

    old_t = tgt_buf[...].astype(jnp.float32)
    new_t = beta * old_t + (1.0 - beta) * y_norm
    new_buf[...] = new_t.astype(new_buf.dtype)

    # Scatter updated rows back to the aliased HBM buffer (shared sem).
    for r, j in enumerate(rows):
        pltpu.make_async_copy(new_buf.at[pl.ds(r, 1)],
                              new_target_hbm.at[pl.ds(j, 1)], sems.at[1]).start()

    dot = jnp.sum(new_t * y_pred, axis=1, keepdims=True)
    terms = jnp.log(jnp.maximum(1.0 - dot, 1e-8))

    @pl.when(i == 0)
    def _():
        elr_ref[...] = jnp.zeros_like(elr_ref)
    elr_ref[...] += jnp.sum(terms)

    # TODO(synk): further overlap (prefetch next tile's gathers, defer these
    # scatter waits to the top of step i+1) is possible; kept simple since the
    # VMEM-resident path above handles every target that fits on-chip.
    for r, j in enumerate(rows):
        pltpu.make_async_copy(new_buf.at[pl.ds(r, 1)],
                              new_target_hbm.at[pl.ds(j, 1)], sems.at[1]).wait()


# ---------------------------------------------------------------------------
# Wrapper
# ---------------------------------------------------------------------------
def _pick_tile(b):
    # 128-256 rows amortize the ~0.35us/step overhead once the target is
    # VMEM-resident; bigger tiles only bloat the unrolled row loops.
    for tb in (256, 128):
        if b % tb == 0:
            return tb
    return b


def _vmem_capacity_bytes():
    try:
        return int(pltpu.get_tpu_info().vmem_capacity_bytes)
    except Exception:
        return 64 * 1024 * 1024      # conservative: v7x per-core VMEM


def elr_loss_forward(target, index, output, label=None, contrastive_loss=0.0,
                     confi_weight=None, *, lambda_idx=5.0, beta=0.9):
    """Functional forward of the PyTorch `elr_loss` module.

    Returns (final_loss, updated_target).  Under jit with `donate_argnums` on
    `target`, the persistent buffer is updated in place (input/output aliased).
    """
    del label, confi_weight                        # unused in the reference forward
    B, C = output.shape
    N, C2 = target.shape
    assert C == C2, "output and target class dims must match"

    tile_b = _pick_tile(B)
    grid = (B // tile_b,)
    index = index.astype(jnp.int32)

    itemsize = jnp.dtype(target.dtype).itemsize
    target_bytes = N * C * itemsize
    pipeline_bytes = (2 * tile_b * C * jnp.dtype(output.dtype).itemsize
                      + 2 * tile_b * C * 4)
    cap = _vmem_capacity_bytes()
    # Size gate (perf review): ~48 MiB resident budget on v7x (64 MiB VMEM),
    # ~110 MiB on v5e/v6e (128 MiB VMEM).
    use_resident = target_bytes <= cap - pipeline_bytes - (12 << 20)

    if use_resident:
        kernel = functools.partial(_elr_resident_kernel, beta=float(beta),
                                   tile_b=tile_b)
        scratch = [
            pltpu.VMEM((N, C), target.dtype),        # resident copy of target
            pltpu.VMEM((tile_b, C), jnp.float32),    # gathered / updated rows
            pltpu.SemaphoreType.DMA((1,)),           # bulk-copy semaphore
        ]
        vmem_needed = target_bytes + pipeline_bytes + tile_b * C * 4 + (4 << 20)
    else:
        kernel = functools.partial(_elr_rowdma_kernel, beta=float(beta),
                                   tile_b=tile_b)
        scratch = [
            pltpu.VMEM((tile_b, C), target.dtype),   # gathered rows
            pltpu.VMEM((tile_b, C), target.dtype),   # updated rows
            pltpu.SemaphoreType.DMA((2,)),           # shared gather/scatter sems
        ]
        vmem_needed = pipeline_bytes + 2 * tile_b * C * itemsize + (4 << 20)

    vmem_limit = int(min(cap, max(vmem_needed, 32 << 20)))

    new_target, elr_sum = pl.pallas_call(
        kernel,
        grid=grid,
        in_specs=[
            pl.BlockSpec(memory_space=pltpu.MemorySpace.SMEM),    # index (B,)
            pl.BlockSpec((tile_b, C), lambda i: (i, 0)),          # logits tile
            pl.BlockSpec(memory_space=pl.ANY),                    # target (HBM)
        ],
        out_specs=(
            pl.BlockSpec(memory_space=pl.ANY),                    # aliased target
            pl.BlockSpec((1, 1), lambda i: (0, 0)),               # ELR sum
        ),
        out_shape=(
            jax.ShapeDtypeStruct((N, C), target.dtype),
            jax.ShapeDtypeStruct((1, 1), jnp.float32),
        ),
        scratch_shapes=scratch,
        input_output_aliases={2: 0},          # target buffer updated in place
        compiler_params=pltpu.CompilerParams(
            # The single grid axis carries the resident target / accumulator /
            # in-place writes, so it must stay sequential.
            # TODO(synk): on v7x the batch tiles could additionally be split
            # across the two TensorCores (core_map + per-core partial sums);
            # left single-core since the resident path is bandwidth-trivial.
            dimension_semantics=("arbitrary",),
            vmem_limit_bytes=vmem_limit,
        ),
    )(index, output, target)

    elr_reg = elr_sum[0, 0] / B                        # mean over the FULL batch
    final_loss = (jnp.asarray(contrastive_loss, dtype=jnp.float32)
                  + lambda_idx * elr_reg)
    return final_loss, new_target


if __name__ == "__main__":
    key = jax.random.PRNGKey(0)
    k_out, k_idx, k_lab, k_cl = jax.random.split(key, 4)

    num_examp, num_classes, batch = 64, 10, 8
    lambda_idx, beta = 5.0, 0.9

    # Persistent ELR target buffer, zero-initialized as in the module __init__.
    target = jnp.zeros((num_examp, num_classes), jnp.float32)

    index = jax.random.permutation(k_idx, num_examp)[:batch].astype(jnp.int32)
    output = jax.random.normal(k_out, (batch, num_classes), jnp.float32)
    label = jax.random.randint(k_lab, (batch,), 0, num_classes)
    contrastive_loss = jax.random.uniform(k_cl, (), jnp.float32)

    # Pure-JAX reference — computed BEFORE the kernel call because `target`
    # is donated (the kernel updates the buffer in place via aliasing).
    yp = jnp.clip(jax.nn.softmax(output, axis=1), 1e-4, 1.0 - 1e-4)
    t_new = beta * target[index] + (1.0 - beta) * (yp / yp.sum(axis=1, keepdims=True))
    elr_reg_ref = jnp.mean(jnp.log(1.0 - jnp.sum(t_new * yp, axis=1)))
    loss_ref = contrastive_loss + lambda_idx * elr_reg_ref
    target_ref = target.at[index].set(t_new)
    jax.block_until_ready((loss_ref, target_ref))

    fwd = jax.jit(
        functools.partial(elr_loss_forward, lambda_idx=lambda_idx, beta=beta),
        donate_argnums=(0,),
    )
    loss, new_target = fwd(target, index, output, label, contrastive_loss)
    jax.block_until_ready((loss, new_target))

    # Loss tolerance covers the approximate EUP reciprocal, which is now used
    # only for the softmax denominator; the persistent EMA target path uses
    # exact divides, so it matches tightly.
    assert jnp.allclose(loss, loss_ref, rtol=2e-3, atol=2e-3), (loss, loss_ref)
    assert jnp.allclose(new_target, target_ref, atol=1e-5), "target buffer mismatch"

    print("KERNEL_OK")
</pallas_src>

<mosaic_0001>
module attributes {stable_mosaic.version = 11 : i64} {
  func.func @_elr_resident_kernel(%arg0: i32, %arg1: memref<8xi32, #tpu.memory_space<smem>>, %arg2: memref<8x10xf32, #tpu.memory_space<vmem>>, %arg3: memref<64x10xf32, #tpu.memory_space<any>>, %arg4: memref<64x10xf32, #tpu.memory_space<any>>, %arg5: memref<1x1xf32, #tpu.memory_space<vmem>>, %arg6: memref<64x10xf32, #tpu.memory_space<vmem>>, %arg7: memref<8x10xf32, #tpu.memory_space<vmem>>, %arg8: memref<1x!tpu.dma_semaphore, #tpu.memory_space<semaphore_mem>>) attributes {dimension_semantics = [#tpu.dimension_semantics<arbitrary>], iteration_bounds = array<i64: 1>, scalar_prefetch = 0 : i64, scratch_operands = 3 : i64, tpu.core_type = #tpu.core_type<tc>, window_params = [{transform_indices = @transform_0, window_bounds = array<i64: 8>}, {transform_indices = @transform_1, window_bounds = array<i64: 8, 10>}, {}, {}, {pipeline_mode = #tpu.pipeline_mode<synchronous>, transform_indices = @transform_4, window_bounds = array<i64: 1, 1>}]} {
    %c8_i32 = arith.constant 8 : i32
    %0 = arith.muli %arg0, %c8_i32 : i32
    %c0_i32 = arith.constant 0 : i32
    %1 = arith.cmpi eq, %arg0, %c0_i32 : i32
    %2 = arith.extui %1 : i1 to i32
    %c0_i32_0 = arith.constant 0 : i32
    %3 = arith.cmpi ne, %2, %c0_i32_0 : i32
    scf.if %3 {
      %c0_i32_72 = arith.constant 0 : i32
      %145 = tpu.memref_slice %arg8[%c0_i32_72] : memref<1x!tpu.dma_semaphore, #tpu.memory_space<semaphore_mem>> -> memref<1x!tpu.dma_semaphore, #tpu.memory_space<semaphore_mem>>
      %146 = tpu.memref_squeeze %145 : memref<1x!tpu.dma_semaphore, #tpu.memory_space<semaphore_mem>> -> memref<!tpu.dma_semaphore, #tpu.memory_space<semaphore_mem>>
      tpu.enqueue_dma source(%arg3 : memref<64x10xf32, #tpu.memory_space<any>>) target(%arg6 : memref<64x10xf32, #tpu.memory_space<vmem>>) target_semaphore(%146 : memref<!tpu.dma_semaphore, #tpu.memory_space<semaphore_mem>>)
      %c0_i32_73 = arith.constant 0 : i32
      %147 = tpu.memref_slice %arg8[%c0_i32_73] : memref<1x!tpu.dma_semaphore, #tpu.memory_space<semaphore_mem>> -> memref<1x!tpu.dma_semaphore, #tpu.memory_space<semaphore_mem>>
      %148 = tpu.memref_squeeze %147 : memref<1x!tpu.dma_semaphore, #tpu.memory_space<semaphore_mem>> -> memref<!tpu.dma_semaphore, #tpu.memory_space<semaphore_mem>>
      tpu.wait_dma2 semaphore(%148 : memref<!tpu.dma_semaphore, #tpu.memory_space<semaphore_mem>>) src(%arg3 : memref<64x10xf32, #tpu.memory_space<any>>) dst(%arg6 : memref<64x10xf32, #tpu.memory_space<vmem>>)
      %cst_74 = arith.constant 0.000000e+00 : f32
      %149 = vector.broadcast %cst_74 : f32 to vector<1x1xf32>
      %c0_75 = arith.constant 0 : index
      %c0_76 = arith.constant 0 : index
      %150 = vector.load %arg5[%c0_75, %c0_76] : memref<1x1xf32, #tpu.memory_space<vmem>>, vector<1x1xf32>
      tpu.vector_store %arg5[%c0_75, %c0_76], %149 {strides = array<i32>} : memref<1x1xf32, #tpu.memory_space<vmem>>, vector<1x1xf32>,
    } else {
    }
    %c0 = arith.constant 0 : index
    %c0_1 = arith.constant 0 : index
    %4 = vector.load %arg2[%c0, %c0_1] : memref<8x10xf32, #tpu.memory_space<vmem>>, vector<8x10xf32>
    %cst = arith.constant dense<0xFF800000> : vector<8xf32>
    %5 = vector.multi_reduction <maximumf>, %4, %cst [1] : vector<8x10xf32> to vector<8xf32>
    %6 = vector.shape_cast %5 : vector<8xf32> to vector<8x1xf32>
    %7 = vector.broadcast %6 : vector<8x1xf32> to vector<8x10xf32>
    %8 = arith.subf %4, %7 : vector<8x10xf32>
    %9 = math.exp %8 : vector<8x10xf32>
    %cst_2 = arith.constant dense<0.000000e+00> : vector<8xf32>
    %10 = vector.multi_reduction <add>, %9, %cst_2 [1] : vector<8x10xf32> to vector<8xf32>
    %11 = vector.shape_cast %10 : vector<8xf32> to vector<8x1xf32>
    %12 = tpu.reciprocal %11 {approx = true} : vector<8x1xf32> -> vector<8x1xf32>
    %13 = vector.broadcast %12 : vector<8x1xf32> to vector<8x10xf32>
    %14 = arith.mulf %9, %13 : vector<8x10xf32>
    %cst_3 = arith.constant 9.99999974E-5 : f32
    %cst_4 = arith.constant 0.999899983 : f32
    %15 = vector.broadcast %cst_3 : f32 to vector<8x10xf32>
    %16 = arith.maximumf %15, %14 : vector<8x10xf32>
    %17 = vector.broadcast %cst_4 : f32 to vector<8x10xf32>
    %18 = arith.minimumf %17, %16 : vector<8x10xf32>
    %cst_5 = arith.constant dense<0.000000e+00> : vector<8xf32>
    %19 = vector.multi_reduction <add>, %18, %cst_5 [1] : vector<8x10xf32> to vector<8xf32>
    %20 = vector.shape_cast %19 : vector<8xf32> to vector<8x1xf32>
    %21 = vector.broadcast %20 : vector<8x1xf32> to vector<8x10xf32>
    %22 = arith.divf %18, %21 : vector<8x10xf32>
    %c0_i32_6 = arith.constant 0 : i32
    %23 = arith.addi %0, %c0_i32_6 : i32
    %24 = arith.index_cast %23 : i32 to index
    %25 = memref.load %arg1[%24] : memref<8xi32, #tpu.memory_space<smem>>
    %26 = arith.index_cast %25 : i32 to index
    %c0_7 = arith.constant 0 : index
    %27 = vector.load %arg6[%26, %c0_7] : memref<64x10xf32, #tpu.memory_space<vmem>>, vector<1x10xf32>
    %c0_8 = arith.constant 0 : index
    %c0_9 = arith.constant 0 : index
    %28 = vector.load %arg7[%c0_8, %c0_9] : memref<8x10xf32, #tpu.memory_space<vmem>>, vector<1x10xf32>
    tpu.vector_store %arg7[%c0_8, %c0_9], %27 {strides = array<i32>} : memref<8x10xf32, #tpu.memory_space<vmem>>, vector<1x10xf32>,
    %c1_i32 = arith.constant 1 : i32
    %29 = arith.addi %0, %c1_i32 : i32
    %30 = arith.index_cast %29 : i32 to index
    %31 = memref.load %arg1[%30] : memref<8xi32, #tpu.memory_space<smem>>
    %32 = arith.index_cast %31 : i32 to index
    %c0_10 = arith.constant 0 : index
    %33 = vector.load %arg6[%32, %c0_10] : memref<64x10xf32, #tpu.memory_space<vmem>>, vector<1x10xf32>
    %c1 = arith.constant 1 : index
    %c0_11 = arith.constant 0 : index
    %34 = vector.load %arg7[%c1, %c0_11] : memref<8x10xf32, #tpu.memory_space<vmem>>, vector<1x10xf32>
    tpu.vector_store %arg7[%c1, %c0_11], %33 {strides = array<i32>} : memref<8x10xf32, #tpu.memory_space<vmem>>, vector<1x10xf32>,
    %c2_i32 = arith.constant 2 : i32
    %35 = arith.addi %0, %c2_i32 : i32
    %36 = arith.index_cast %35 : i32 to index
    %37 = memref.load %arg1[%36] : memref<8xi32, #tpu.memory_space<smem>>
    %38 = arith.index_cast %37 : i32 to index
    %c0_12 = arith.constant 0 : index
    %39 = vector.load %arg6[%38, %c0_12] : memref<64x10xf32, #tpu.memory_space<vmem>>, vector<1x10xf32>
    %c2 = arith.constant 2 : index
    %c0_13 = arith.constant 0 : index
    %40 = vector.load %arg7[%c2, %c0_13] : memref<8x10xf32, #tpu.memory_space<vmem>>, vector<1x10xf32>
    tpu.vector_store %arg7[%c2, %c0_13], %39 {strides = array<i32>} : memref<8x10xf32, #tpu.memory_space<vmem>>, vector<1x10xf32>,
    %c3_i32 = arith.constant 3 : i32
    %41 = arith.addi %0, %c3_i32 : i32
    %42 = arith.index_cast %41 : i32 to index
    %43 = memref.load %arg1[%42] : memref<8xi32, #tpu.memory_space<smem>>
    %44 = arith.index_cast %43 : i32 to index
    %c0_14 = arith.constant 0 : index
    %45 = vector.load %arg6[%44, %c0_14] : memref<64x10xf32, #tpu.memory_space<vmem>>, vector<1x10xf32>
    %c3 = arith.constant 3 : index
    %c0_15 = arith.constant 0 : index
    %46 = vector.load %arg7[%c3, %c0_15] : memref<8x10xf32, #tpu.memory_space<vmem>>, vector<1x10xf32>
    tpu.vector_store %arg7[%c3, %c0_15], %45 {strides = array<i32>} : memref<8x10xf32, #tpu.memory_space<vmem>>, vector<1x10xf32>,
    %c4_i32 = arith.constant 4 : i32
    %47 = arith.addi %0, %c4_i32 : i32
    %48 = arith.index_cast %47 : i32 to index
    %49 = memref.load %arg1[%48] : memref<8xi32, #tpu.memory_space<smem>>
    %50 = arith.index_cast %49 : i32 to index
    %c0_16 = arith.constant 0 : index
    %51 = vector.load %arg6[%50, %c0_16] : memref<64x10xf32, #tpu.memory_space<vmem>>, vector<1x10xf32>
    %c4 = arith.constant 4 : index
    %c0_17 = arith.constant 0 : index
    %52 = vector.load %arg7[%c4, %c0_17] : memref<8x10xf32, #tpu.memory_space<vmem>>, vector<1x10xf32>
    tpu.vector_store %arg7[%c4, %c0_17], %51 {strides = array<i32>} : memref<8x10xf32, #tpu.memory_space<vmem>>, vector<1x10xf32>,
    %c5_i32 = arith.constant 5 : i32
    %53 = arith.addi %0, %c5_i32 : i32
    %54 = arith.index_cast %53 : i32 to index
    %55 = memref.load %arg1[%54] : memref<8xi32, #tpu.memory_space<smem>>
    %56 = arith.index_cast %55 : i32 to index
    %c0_18 = arith.constant 0 : index
    %57 = vector.load %arg6[%56, %c0_18] : memref<64x10xf32, #tpu.memory_space<vmem>>, vector<1x10xf32>
    %c5 = arith.constant 5 : index
    %c0_19 = arith.constant 0 : index
    %58 = vector.load %arg7[%c5, %c0_19] : memref<8x10xf32, #tpu.memory_space<vmem>>, vector<1x10xf32>
    tpu.vector_store %arg7[%c5, %c0_19], %57 {strides = array<i32>} : memref<8x10xf32, #tpu.memory_space<vmem>>, vector<1x10xf32>,
    %c6_i32 = arith.constant 6 : i32
    %59 = arith.addi %0, %c6_i32 : i32
    %60 = arith.index_cast %59 : i32 to index
    %61 = memref.load %arg1[%60] : memref<8xi32, #tpu.memory_space<smem>>
    %62 = arith.index_cast %61 : i32 to index
    %c0_20 = arith.constant 0 : index
    %63 = vector.load %arg6[%62, %c0_20] : memref<64x10xf32, #tpu.memory_space<vmem>>, vector<1x10xf32>
    %c6 = arith.constant 6 : index
    %c0_21 = arith.constant 0 : index
    %64 = vector.load %arg7[%c6, %c0_21] : memref<8x10xf32, #tpu.memory_space<vmem>>, vector<1x10xf32>
    tpu.vector_store %arg7[%c6, %c0_21], %63 {strides = array<i32>} : memref<8x10xf32, #tpu.memory_space<vmem>>, vector<1x10xf32>,
    %c7_i32 = arith.constant 7 : i32
    %65 = arith.addi %0, %c7_i32 : i32
    %66 = arith.index_cast %65 : i32 to index
    %67 = memref.load %arg1[%66] : memref<8xi32, #tpu.memory_space<smem>>
    %68 = arith.index_cast %67 : i32 to index
    %c0_22 = arith.constant 0 : index
    %69 = vector.load %arg6[%68, %c0_22] : memref<64x10xf32, #tpu.memory_space<vmem>>, vector<1x10xf32>
    %c7 = arith.constant 7 : index
    %c0_23 = arith.constant 0 : index
    %70 = vector.load %arg7[%c7, %c0_23] : memref<8x10xf32, #tpu.memory_space<vmem>>, vector<1x10xf32>
    tpu.vector_store %arg7[%c7, %c0_23], %69 {strides = array<i32>} : memref<8x10xf32, #tpu.memory_space<vmem>>, vector<1x10xf32>,
    %c0_24 = arith.constant 0 : index
    %c0_25 = arith.constant 0 : index
    %71 = vector.load %arg7[%c0_24, %c0_25] : memref<8x10xf32, #tpu.memory_space<vmem>>, vector<8x10xf32>
    %cst_26 = arith.constant 0.899999976 : f32
    %72 = vector.broadcast %cst_26 : f32 to vector<8x10xf32>
    %73 = arith.mulf %72, %71 : vector<8x10xf32>
    %cst_27 = arith.constant 1.000000e-01 : f32
    %74 = vector.broadcast %cst_27 : f32 to vector<8x10xf32>
    %75 = arith.mulf %74, %22 : vector<8x10xf32>
    %76 = arith.addf %73, %75 : vector<8x10xf32>
    %c0_28 = arith.constant 0 : index
    %c0_29 = arith.constant 0 : index
    %77 = vector.load %arg7[%c0_28, %c0_29] : memref<8x10xf32, #tpu.memory_space<vmem>>, vector<8x10xf32>
    tpu.vector_store %arg7[%c0_28, %c0_29], %76 {strides = array<i32>} : memref<8x10xf32, #tpu.memory_space<vmem>>, vector<8x10xf32>,
    %c0_i32_30 = arith.constant 0 : i32
    %78 = arith.addi %0, %c0_i32_30 : i32
    %79 = arith.index_cast %78 : i32 to index
    %80 = memref.load %arg1[%79] : memref<8xi32, #tpu.memory_space<smem>>
    %c0_31 = arith.constant 0 : index
    %c0_32 = arith.constant 0 : index
    %81 = vector.load %arg7[%c0_31, %c0_32] : memref<8x10xf32, #tpu.memory_space<vmem>>, vector<1x10xf32>
    %82 = arith.index_cast %80 : i32 to index
    %c0_33 = arith.constant 0 : index
    %83 = vector.load %arg6[%82, %c0_33] : memref<64x10xf32, #tpu.memory_space<vmem>>, vector<1x10xf32>
    tpu.vector_store %arg6[%82, %c0_33], %81 {strides = array<i32>} : memref<64x10xf32, #tpu.memory_space<vmem>>, vector<1x10xf32>,
    %c1_i32_34 = arith.constant 1 : i32
    %84 = arith.addi %0, %c1_i32_34 : i32
    %85 = arith.index_cast %84 : i32 to index
    %86 = memref.load %arg1[%85] : memref<8xi32, #tpu.memory_space<smem>>
    %c1_35 = arith.constant 1 : index
    %c0_36 = arith.constant 0 : index
    %87 = vector.load %arg7[%c1_35, %c0_36] : memref<8x10xf32, #tpu.memory_space<vmem>>, vector<1x10xf32>
    %88 = arith.index_cast %86 : i32 to index
    %c0_37 = arith.constant 0 : index
    %89 = vector.load %arg6[%88, %c0_37] : memref<64x10xf32, #tpu.memory_space<vmem>>, vector<1x10xf32>
    tpu.vector_store %arg6[%88, %c0_37], %87 {strides = array<i32>} : memref<64x10xf32, #tpu.memory_space<vmem>>, vector<1x10xf32>,
    %c2_i32_38 = arith.constant 2 : i32
    %90 = arith.addi %0, %c2_i32_38 : i32
    %91 = arith.index_cast %90 : i32 to index
    %92 = memref.load %arg1[%91] : memref<8xi32, #tpu.memory_space<smem>>
    %c2_39 = arith.constant 2 : index
    %c0_40 = arith.constant 0 : index
    %93 = vector.load %arg7[%c2_39, %c0_40] : memref<8x10xf32, #tpu.memory_space<vmem>>, vector<1x10xf32>
    %94 = arith.index_cast %92 : i32 to index
    %c0_41 = arith.constant 0 : index
    %95 = vector.load %arg6[%94, %c0_41] : memref<64x10xf32, #tpu.memory_space<vmem>>, vector<1x10xf32>
    tpu.vector_store %arg6[%94, %c0_41], %93 {strides = array<i32>} : memref<64x10xf32, #tpu.memory_space<vmem>>, vector<1x10xf32>,
    %c3_i32_42 = arith.constant 3 : i32
    %96 = arith.addi %0, %c3_i32_42 : i32
    %97 = arith.index_cast %96 : i32 to index
    %98 = memref.load %arg1[%97] : memref<8xi32, #tpu.memory_space<smem>>
    %c3_43 = arith.constant 3 : index
    %c0_44 = arith.constant 0 : index
    %99 = vector.load %arg7[%c3_43, %c0_44] : memref<8x10xf32, #tpu.memory_space<vmem>>, vector<1x10xf32>
    %100 = arith.index_cast %98 : i32 to index
    %c0_45 = arith.constant 0 : index
    %101 = vector.load %arg6[%100, %c0_45] : memref<64x10xf32, #tpu.memory_space<vmem>>, vector<1x10xf32>
    tpu.vector_store %arg6[%100, %c0_45], %99 {strides = array<i32>} : memref<64x10xf32, #tpu.memory_space<vmem>>, vector<1x10xf32>,
    %c4_i32_46 = arith.constant 4 : i32
    %102 = arith.addi %0, %c4_i32_46 : i32
    %103 = arith.index_cast %102 : i32 to index
    %104 = memref.load %arg1[%103] : memref<8xi32, #tpu.memory_space<smem>>
    %c4_47 = arith.constant 4 : index
    %c0_48 = arith.constant 0 : index
    %105 = vector.load %arg7[%c4_47, %c0_48] : memref<8x10xf32, #tpu.memory_space<vmem>>, vector<1x10xf32>
    %106 = arith.index_cast %104 : i32 to index
    %c0_49 = arith.constant 0 : index
    %107 = vector.load %arg6[%106, %c0_49] : memref<64x10xf32, #tpu.memory_space<vmem>>, vector<1x10xf32>
    tpu.vector_store %arg6[%106, %c0_49], %105 {strides = array<i32>} : memref<64x10xf32, #tpu.memory_space<vmem>>, vector<1x10xf32>,
    %c5_i32_50 = arith.constant 5 : i32
    %108 = arith.addi %0, %c5_i32_50 : i32
    %109 = arith.index_cast %108 : i32 to index
    %110 = memref.load %arg1[%109] : memref<8xi32, #tpu.memory_space<smem>>
    %c5_51 = arith.constant 5 : index
    %c0_52 = arith.constant 0 : index
    %111 = vector.load %arg7[%c5_51, %c0_52] : memref<8x10xf32, #tpu.memory_space<vmem>>, vector<1x10xf32>
    %112 = arith.index_cast %110 : i32 to index
    %c0_53 = arith.constant 0 : index
    %113 = vector.load %arg6[%112, %c0_53] : memref<64x10xf32, #tpu.memory_space<vmem>>, vector<1x10xf32>
    tpu.vector_store %arg6[%112, %c0_53], %111 {strides = array<i32>} : memref<64x10xf32, #tpu.memory_space<vmem>>, vector<1x10xf32>,
    %c6_i32_54 = arith.constant 6 : i32
    %114 = arith.addi %0, %c6_i32_54 : i32
    %115 = arith.index_cast %114 : i32 to index
    %116 = memref.load %arg1[%115] : memref<8xi32, #tpu.memory_space<smem>>
    %c6_55 = arith.constant 6 : index
    %c0_56 = arith.constant 0 : index
    %117 = vector.load %arg7[%c6_55, %c0_56] : memref<8x10xf32, #tpu.memory_space<vmem>>, vector<1x10xf32>
    %118 = arith.index_cast %116 : i32 to index
    %c0_57 = arith.constant 0 : index
    %119 = vector.load %arg6[%118, %c0_57] : memref<64x10xf32, #tpu.memory_space<vmem>>, vector<1x10xf32>
    tpu.vector_store %arg6[%118, %c0_57], %117 {strides = array<i32>} : memref<64x10xf32, #tpu.memory_space<vmem>>, vector<1x10xf32>,
    %c7_i32_58 = arith.constant 7 : i32
    %120 = arith.addi %0, %c7_i32_58 : i32
    %121 = arith.index_cast %120 : i32 to index
    %122 = memref.load %arg1[%121] : memref<8xi32, #tpu.memory_space<smem>>
    %c7_59 = arith.constant 7 : index
    %c0_60 = arith.constant 0 : index
    %123 = vector.load %arg7[%c7_59, %c0_60] : memref<8x10xf32, #tpu.memory_space<vmem>>, vector<1x10xf32>
    %124 = arith.index_cast %122 : i32 to index
    %c0_61 = arith.constant 0 : index
    %125 = vector.load %arg6[%124, %c0_61] : memref<64x10xf32, #tpu.memory_space<vmem>>, vector<1x10xf32>
    tpu.vector_store %arg6[%124, %c0_61], %123 {strides = array<i32>} : memref<64x10xf32, #tpu.memory_space<vmem>>, vector<1x10xf32>,
    %126 = arith.mulf %76, %18 : vector<8x10xf32>
    %cst_62 = arith.constant dense<0.000000e+00> : vector<8xf32>
    %127 = vector.multi_reduction <add>, %126, %cst_62 [1] : vector<8x10xf32> to vector<8xf32>
    %128 = vector.shape_cast %127 : vector<8xf32> to vector<8x1xf32>
    %c0_63 = arith.constant 0 : index
    %c0_64 = arith.constant 0 : index
    %129 = vector.load %arg5[%c0_63, %c0_64] : memref<1x1xf32, #tpu.memory_space<vmem>>, vector<1x1xf32>
    %cst_65 = arith.constant 1.000000e+00 : f32
    %130 = vector.broadcast %cst_65 : f32 to vector<8x1xf32>
    %131 = arith.subf %130, %128 : vector<8x1xf32>
    %cst_66 = arith.constant 9.99999993E-9 : f32
    %132 = vector.broadcast %cst_66 : f32 to vector<8x1xf32>
    %133 = arith.maximumf %131, %132 : vector<8x1xf32>
    %134 = math.log %133 : vector<8x1xf32>
    %135 = vector.shape_cast %134 : vector<8x1xf32> to vector<1x8x1xf32>
    %cst_67 = arith.constant dense<0.000000e+00> : vector<1xf32>
    %136 = vector.multi_reduction <add>, %135, %cst_67 [1, 2] : vector<1x8x1xf32> to vector<1xf32>
    %137 = vector.shape_cast %136 : vector<1xf32> to vector<1x1x1xf32>
    %138 = vector.extract %137[0, 0, 0] : f32 from vector<1x1x1xf32>
    %139 = vector.broadcast %138 : f32 to vector<1x1xf32>
    %140 = arith.addf %129, %139 : vector<1x1xf32>
    %c0_68 = arith.constant 0 : index
    %c0_69 = arith.constant 0 : index
    %141 = vector.load %arg5[%c0_68, %c0_69] : memref<1x1xf32, #tpu.memory_space<vmem>>, vector<1x1xf32>
    tpu.vector_store %arg5[%c0_68, %c0_69], %140 {strides = array<i32>} : memref<1x1xf32, #tpu.memory_space<vmem>>, vector<1x1xf32>,
    %c0_i32_70 = arith.constant 0 : i32
    %142 = arith.cmpi eq, %arg0, %c0_i32_70 : i32
    %143 = arith.extui %142 : i1 to i32
    %c0_i32_71 = arith.constant 0 : i32
    %144 = arith.cmpi ne, %143, %c0_i32_71 : i32
    scf.if %144 {
      %c0_i32_72 = arith.constant 0 : i32
      %145 = tpu.memref_slice %arg8[%c0_i32_72] : memref<1x!tpu.dma_semaphore, #tpu.memory_space<semaphore_mem>> -> memref<1x!tpu.dma_semaphore, #tpu.memory_space<semaphore_mem>>
      %146 = tpu.memref_squeeze %145 : memref<1x!tpu.dma_semaphore, #tpu.memory_space<semaphore_mem>> -> memref<!tpu.dma_semaphore, #tpu.memory_space<semaphore_mem>>
      tpu.enqueue_dma source(%arg6 : memref<64x10xf32, #tpu.memory_space<vmem>>) target(%arg4 : memref<64x10xf32, #tpu.memory_space<any>>) target_semaphore(%146 : memref<!tpu.dma_semaphore, #tpu.memory_space<semaphore_mem>>)
      %c0_i32_73 = arith.constant 0 : i32
      %147 = tpu.memref_slice %arg8[%c0_i32_73] : memref<1x!tpu.dma_semaphore, #tpu.memory_space<semaphore_mem>> -> memref<1x!tpu.dma_semaphore, #tpu.memory_space<semaphore_mem>>
      %148 = tpu.memref_squeeze %147 : memref<1x!tpu.dma_semaphore, #tpu.memory_space<semaphore_mem>> -> memref<!tpu.dma_semaphore, #tpu.memory_space<semaphore_mem>>
      tpu.wait_dma2 semaphore(%148 : memref<!tpu.dma_semaphore, #tpu.memory_space<semaphore_mem>>) src(%arg6 : memref<64x10xf32, #tpu.memory_space<vmem>>) dst(%arg4 : memref<64x10xf32, #tpu.memory_space<any>>)
    } else {
    }
    return
  }
  func.func @transform_0(%arg0: i32) -> i32 {
    %c0_i32 = arith.constant 0 : i32
    %c0_i32_0 = arith.constant 0 : i32
    return %c0_i32 : i32
  }
  func.func @transform_1(%arg0: i32) -> (i32, i32) {
    %c0_i32 = arith.constant 0 : i32
    %c0_i32_0 = arith.constant 0 : i32
    return %arg0, %c0_i32 : i32, i32
  }
  func.func @transform_4(%arg0: i32) -> (i32, i32) {
    %c0_i32 = arith.constant 0 : i32
    %c0_i32_0 = arith.constant 0 : i32
    %c0_i32_1 = arith.constant 0 : i32
    return %c0_i32, %c0_i32_0 : i32, i32
  }
}

</mosaic_0001>

<llo_original>
// kernel: elr_loss_forward.1
$region0: #{elr_loss_forward.1}
  #allocation0 [shape = 'u32[]', space=smem, size = 0x4, offset = 0x4, fixed_abs, tag = 'smem constant byte address 0x4 - core index']
  #allocation1 [shape = 'u32[72,128]{1,0:T(1,128)}', space=vmem, size = 0x9000, scoped, tag = 'internal scratch']
  #allocation2 [shape = 'f32[64,10]{1,0:T(8,128)}', space=vmem, size = 0x8000, scoped, tag = 'scratch operand']
  #allocation3 [shape = 'f32[8,10]{1,0:T(8,128)}', space=vmem, size = 0x1000, scoped, tag = 'scratch operand']
  #allocation4 [shape = 's32[1]{0}', space=sflag, size = 0x4, scoped, tag = 'scratch operand']
  #allocation9 [shape = 's32[]', space=sflag, size = 0x4, offset = 0, fixed_abs, tag = 'sflag constant byte address 0x0 - dummy sync flag']
  #allocation10 [shape = 's32[]', space=sflag, size = 0x4, offset = 0, fixed_abs, tag = 'sflag constant byte address 0x0 - dummy sync flag']
  %s0 = inlined_call_operand.vmem [shape: s32[8], index: 0, kind: input, shape index: {}]
  %s1 = inlined_call_operand.vmem [shape: f32[8,10], index: 1, kind: input, shape index: {}]
  %s2 = inlined_call_operand.vmem [shape: f32[64,10], index: 2, kind: input, shape index: {}, may-alias: {2,3}]
  %s3 = inlined_call_operand.vmem [shape: f32[64,10], index: 3, kind: output, shape index: {0}, may-alias: {2,3}]
  %s4 = inlined_call_operand.hbm [shape: f32[1,1], index: 4, kind: output, shape index: {1}]
  %5 = xla_tuple %s3, %s4
  %s6 = sld [smem:[#allocation0]]
  $region68: #{elr_loss_forward.1} parent=0
    _
  %s8 = ssub.s32 1, %s6
  %s9 = scalar_select 0, %s8, %s6
  $region1: #{elr_loss_forward.1} parent=0
    #allocation5 [shape = 'u8[512]{0}', space=smem, size = 0x200, scoped, tag = 'input window, operand 0, single buffered']
    #allocation6 [shape = 's32[1]{0}', space=sflag, size = 0x4, scoped, tag = 'scoped memory for elr_loss_forward.1']
    #allocation7 [shape = 's32[1]{0}', space=sflag, size = 0x4, scoped, tag = 'scoped memory for elr_loss_forward.1']
    #allocation8 [shape = 'u8[512]{0}', space=vmem, size = 0x400, scoped, tag = 'output window, operand 1, single buffered']
    %10 = vsyncpa [#allocation7], 0
    %11 = vsyncpa [#allocation6], 0
    // Predicated region
    $region2: #{elr_loss_forward.1} parent=1 // pred_check
      _
    $region3: #{elr_loss_forward.1} parent=1 // pred_check_branch
      %13 = sbr.rel (0) target = $region5
    $region4: #{elr_loss_forward.1} parent=1 // pred_region
      %15 = vsyncadd [#allocation7], 0
      %s17 = sshll.u32 %s0, 4
      %s18 = int_to_ptr.vmem [resolvable:$true] %s17
      %20 = dma.vmem_to_smem %s18, 16, [#allocation5], [#allocation7]
    $region5: #{elr_loss_forward.1} parent=1 // pred_fallthru
      _
    // Predicated region
    $region6: #{elr_loss_forward.1} parent=1 // pred_check
      _
    $region7: #{elr_loss_forward.1} parent=1 // pred_check_branch
      %22 = sbr.rel (0) target = $region9
    $region8: #{elr_loss_forward.1} parent=1 // pred_region
      _
    $region9: #{elr_loss_forward.1} parent=1 // pred_fallthru
      _
    // Predicated region
    $region10: #{elr_loss_forward.1} parent=1 // pred_check
      _
    $region11: #{elr_loss_forward.1} parent=1 // pred_check_branch
      %24 = sbr.rel (0) target = $region13
    $region12: #{elr_loss_forward.1} parent=1 // pred_region
      %26 = dma.done [#allocation7], 16
    $region13: #{elr_loss_forward.1} parent=1 // pred_fallthru
      _
    %27 = sfence
    %s28 = smul.u32 0, 8
    %p29 = scmp.eq.s32.totalorder 0, 0
    // Predicated region
    $region14: #{elr_loss_forward.1} parent=1 // pred_check
      %p30 = pneg %p29
    $region15: #{elr_loss_forward.1} parent=1 // pred_check_branch
      %32 = sbr.rel (%p30) target = $region17
    $region16: #{elr_loss_forward.1} parent=1 // pred_region
      // Predicated region
      $region18: #{elr_loss_forward.1} parent=16 // pred_check
        _
      $region19: #{elr_loss_forward.1} parent=16 // pred_check_branch
        %34 = sbr.rel (0) target = $region21
      $region20: #{elr_loss_forward.1} parent=16 // pred_region
        loop: start=0, step=1, limit=1
        $region22: #{elr_loss_forward.1} parent=20 // loop_pre_header
          _
        $region23: #{elr_loss_forward.1} parent=20 // loop_header
          %s36 = sphi 0, %s40
          %p37 = scmp.ge.s32.totalorder %s36, 1
          %s41 = sphi %s2, %s2
          %s42 = sphi [#allocation2], [#allocation2]
        $region24: #{elr_loss_forward.1} parent=20 // loop_header_branch
          %39 = sbr.rel (%p37) target = $region28
        $region25: #{elr_loss_forward.1} parent=20 // loop_body
          %v43 = vld [vmem:[%s41] sm:$0xff]
          %44 = vst [vmem:[%s42] sm:$0xff] %v43
          %v45 = vld [vmem:[%s41 + $0x8] sm:$0xff]
          %46 = vst [vmem:[%s42 + $0x8] sm:$0xff] %v45
          %v47 = vld [vmem:[%s41 + $0x10] sm:$0xff]
          %48 = vst [vmem:[%s42 + $0x10] sm:$0xff] %v47
          %v49 = vld [vmem:[%s41 + $0x18] sm:$0xff]
          %50 = vst [vmem:[%s42 + $0x18] sm:$0xff] %v49
          %v51 = vld [vmem:[%s41 + $0x20] sm:$0xff]
          %52 = vst [vmem:[%s42 + $0x20] sm:$0xff] %v51
          %v53 = vld [vmem:[%s41 + $0x28] sm:$0xff]
          %54 = vst [vmem:[%s42 + $0x28] sm:$0xff] %v53
          %v55 = vld [vmem:[%s41 + $0x30] sm:$0xff]
          %56 = vst [vmem:[%s42 + $0x30] sm:$0xff] %v55
          %v57 = vld [vmem:[%s41 + $0x38] sm:$0xff]
          %58 = vst [vmem:[%s42 + $0x38] sm:$0xff] %v57
        $region26: #{elr_loss_forward.1} parent=20 // loop_footer
          %s40 = sadd.s32 1, %s36
        $region27: #{elr_loss_forward.1} parent=20 // loop_footer_branch
          %35 = sbr.rel target = $region23
        $region28: #{elr_loss_forward.1} parent=20 // loop_exit
          _
      $region21: #{elr_loss_forward.1} parent=16 // pred_fallthru
        _
      // Predicated region
      $region29: #{elr_loss_forward.1} parent=16 // pred_check
        _
      $region30: #{elr_loss_forward.1} parent=16 // pred_check_branch
        %60 = sbr.rel target = $region32
      $region31: #{elr_loss_forward.1} parent=16 // pred_region
        _
      $region32: #{elr_loss_forward.1} parent=16 // pred_fallthru
        _
      // Predicated region
      $region33: #{elr_loss_forward.1} parent=16 // pred_check
        _
      $region34: #{elr_loss_forward.1} parent=16 // pred_check_branch
        %63 = sbr.rel (0) target = $region36
      $region35: #{elr_loss_forward.1} parent=16 // pred_region
        %64 = vsyncadd [#allocation4], 1024
      $region36: #{elr_loss_forward.1} parent=16 // pred_fallthru
        _
      %s65 = smul.u32 64, 1
      %s66 = sshll.u32 %s65, 4
      %67 = dma.done [#allocation4], %s66
      %vm68 = vcmask 0
      %69 = vst.msk [vmem:[#allocation8] sm:$0x1] %vm68, 0.0
    $region17: #{elr_loss_forward.1} parent=1 // pred_fallthru
      _
    %v70 = vld [vmem:[%s1] sm:$0xff]
    %vm71 = vcmask 80896
    %v72 = vsel %vm71, %v70, -inf
    %73 = vmax.xlane.f32.xlu0 %v72
    %v74 = vpop.xlane.xlu0 %73
    %v75 = vsub.f32 %v70, %v74
    %v76 = vmul.f32 %v75, 1.442695
    %v77 = vpow.pop %v76
    %v78 = vsel %vm71, %v77, 0.0
    %79 = vadd.xlane.f32.xlu0 %v78
    %v80 = vpop.xlane.xlu0 %79
    %v81 = vrcp.pop %v80
    %v82 = vmul.f32 %v77, %v81
    %v83 = vmax.f32 %v82, 0.0001
    %v84 = vmin.f32 %v83, 0.9999
    %v85 = vsel %vm71, %v84, 0.0
    %86 = vadd.xlane.f32.xlu0 %v85
    %v87 = vpop.xlane.xlu0 %86
    %v88 = vrcp.pop %v87
    %v89 = vmul.f32 %v87, %v88
    %v90 = vsub.f32 1.0, %v89
    %v91 = vmul.f32 %v88, %v90
    %v92 = vadd.f32 %v88, %v91
    %vm93 = vweird.f32 %v87
    %vm94 = vweird.f32 %v88
    %vm95 = vmor %vm93, %vm94
    %v96 = vsel %vm95, %v88, %v92
    %v97 = vand.u32 2147483647, %v87
    %vm98 = vcmp.eq.f32.partialorder %v97, 8.507059e+37
    %v99 = vand.u32 %v87, 2147483648
    %v100 = vor.u32 1.1754944e-38, %v99
    %v101 = vsel %vm98, %v100, %v96
    %v102 = vmul.f32 %v84, %v101
    %s103 = sld [smem:[#allocation5 + %s28]]
    %s104 = scalar_lea.vmem [#allocation2], %s103
    %v105 = vld [vmem:[%s104] sm:$0x1]
    %vm106 = vcmask 73728
    %107 = vst.msk [vmem:[#allocation3] sm:$0x1] %vm106, %v105
    %s108 = sadd.s32 %s28, 1
    %s109 = sld [smem:[#allocation5 + %s108]]
    %s110 = scalar_lea.vmem [#allocation2], %s109
    %v111 = vld [vmem:[%s110] sm:$0x1]
    %112 = vst.msk [vmem:[#allocation3 + $0x1] sm:$0x1] %vm106, %v111
    %s113 = sadd.s32 %s28, 2
    %s114 = sld [smem:[#allocation5 + %s113]]
    %s115 = scalar_lea.vmem [#allocation2], %s114
    %v116 = vld [vmem:[%s115] sm:$0x1]
    %117 = vst.msk [vmem:[#allocation3 + $0x2] sm:$0x1] %vm106, %v116
    %s118 = sadd.s32 %s28, 3
    %s119 = sld [smem:[#allocation5 + %s118]]
    %s120 = scalar_lea.vmem [#allocation2], %s119
    %v121 = vld [vmem:[%s120] sm:$0x1]
    %122 = vst.msk [vmem:[#allocation3 + $0x3] sm:$0x1] %vm106, %v121
    %s123 = sadd.s32 %s28, 4
    %s124 = sld [smem:[#allocation5 + %s123]]
    %s125 = scalar_lea.vmem [#allocation2], %s124
    %v126 = vld [vmem:[%s125] sm:$0x1]
    %127 = vst.msk [vmem:[#allocation3 + $0x4] sm:$0x1] %vm106, %v126
    %s128 = sadd.s32 %s28, 5
    %s129 = sld [smem:[#allocation5 + %s128]]
    %s130 = scalar_lea.vmem [#allocation2], %s129
    %v131 = vld [vmem:[%s130] sm:$0x1]
    %132 = vst.msk [vmem:[#allocation3 + $0x5] sm:$0x1] %vm106, %v131
    %s133 = sadd.s32 %s28, 6
    %s134 = sld [smem:[#allocation5 + %s133]]
    %s135 = scalar_lea.vmem [#allocation2], %s134
    %v136 = vld [vmem:[%s135] sm:$0x1]
    %137 = vst.msk [vmem:[#allocation3 + $0x6] sm:$0x1] %vm106, %v136
    %s138 = sadd.s32 %s28, 7
    %s139 = sld [smem:[#allocation5 + %s138]]
    %s140 = scalar_lea.vmem [#allocation2], %s139
    %v141 = vld [vmem:[%s140] sm:$0x1]
    %142 = vst.msk [vmem:[#allocation3 + $0x7] sm:$0x1] %vm106, %v141
    %v143 = vld [vmem:[#allocation3] sm:$0xff]
    %v144 = vmul.f32 %v143, 0.9
    %v145 = vmul.f32 %v102, 0.1
    %v146 = vadd.f32 %v144, %v145
    %147 = vst.msk [vmem:[#allocation3] sm:$0xff] %vm71, %v146
    %s148 = sld [smem:[#allocation5 + %s28]]
    %v149 = vld [vmem:[#allocation3] sm:$0x1]
    %s150 = scalar_lea.vmem [#allocation2], %s148
    %151 = vst.msk [vmem:[%s150] sm:$0x1] %vm106, %v149
    %s152 = sld [smem:[#allocation5 + %s108]]
    %v153 = vld [vmem:[#allocation3 + $0x1] sm:$0x1]
    %s154 = scalar_lea.vmem [#allocation2], %s152
    %155 = vst.msk [vmem:[%s154] sm:$0x1] %vm106, %v153
    %s156 = sld [smem:[#allocation5 + %s113]]
    %v157 = vld [vmem:[#allocation3 + $0x2] sm:$0x1]
    %s158 = scalar_lea.vmem [#allocation2], %s156
    %159 = vst.msk [vmem:[%s158] sm:$0x1] %vm106, %v157
    %s160 = sld [smem:[#allocation5 + %s118]]
    %v161 = vld [vmem:[#allocation3 + $0x3] sm:$0x1]
    %s162 = scalar_lea.vmem [#allocation2], %s160
    %163 = vst.msk [vmem:[%s162] sm:$0x1] %vm106, %v161
    %s164 = sld [smem:[#allocation5 + %s123]]
    %v165 = vld [vmem:[#allocation3 + $0x4] sm:$0x1]
    %s166 = scalar_lea.vmem [#allocation2], %s164
    %167 = vst.msk [vmem:[%s166] sm:$0x1] %vm106, %v165
    %s168 = sld [smem:[#allocation5 + %s128]]
    %v169 = vld [vmem:[#allocation3 + $0x5] sm:$0x1]
    %s170 = scalar_lea.vmem [#allocation2], %s168
    %171 = vst.msk [vmem:[%s170] sm:$0x1] %vm106, %v169
    %s172 = sld [smem:[#allocation5 + %s133]]
    %v173 = vld [vmem:[#allocation3 + $0x6] sm:$0x1]
    %s174 = scalar_lea.vmem [#allocation2], %s172
    %175 = vst.msk [vmem:[%s174] sm:$0x1] %vm106, %v173
    %s176 = sld [smem:[#allocation5 + %s138]]
    %v177 = vld [vmem:[#allocation3 + $0x7] sm:$0x1]
    %s178 = scalar_lea.vmem [#allocation2], %s176
    %179 = vst.msk [vmem:[%s178] sm:$0x1] %vm106, %v177
    %v180 = vmul.f32 %v146, %v84
    %v181 = vsel %vm71, %v180, 0.0
    %182 = vadd.xlane.f32.xlu0 %v181
    %v183 = vpop.xlane.xlu0 %182
    %v184 = vld [vmem:[#allocation8] sm:$0x1]
    %v185 = vsub.f32 1.0, %v183
    %v186 = vmax.f32 %v185, 1e-08
    %v187 = vlog2.pop %v186
    %v188 = vmul.f32 %v187, 0.6931472
    %vm189 = vcmask 7168
    %v190 = vsel %vm189, %v188, 0.0
    %191 = vadd.xlane.f32.xlu0 %v190
    %v192 = vpop.xlane.xlu0 %191
    %v193 = vrot.slane %v192, 4
    %v194 = vadd.f32 %v192, %v193
    %v195 = vrot.slane %v194, 2
    %v196 = vadd.f32 %v194, %v195
    %v197 = vrot.slane %v196, 1
    %v198 = vadd.f32 %v196, %v197
    %s199 = vtos %v198
    %v200 = vstv %s199
    %v201 = vadd.f32 %v184, %v200
    %vm202 = vcmask 0
    %203 = vst.msk [vmem:[#allocation8] sm:$0x1] %vm202, %v201
    // Predicated region
    $region37: #{elr_loss_forward.1} parent=1 // pred_check
      %p204 = pneg %p29
    $region38: #{elr_loss_forward.1} parent=1 // pred_check_branch
      %206 = sbr.rel (%p204) target = $region40
    $region39: #{elr_loss_forward.1} parent=1 // pred_region
      // Predicated region
      $region41: #{elr_loss_forward.1} parent=39 // pred_check
        _
      $region42: #{elr_loss_forward.1} parent=39 // pred_check_branch
        %208 = sbr.rel (0) target = $region44
      $region43: #{elr_loss_forward.1} parent=39 // pred_region
        loop: start=0, step=1, limit=1
        $region45: #{elr_loss_forward.1} parent=43 // loop_pre_header
          _
        $region46: #{elr_loss_forward.1} parent=43 // loop_header
          %s210 = sphi 0, %s214
          %p211 = scmp.ge.s32.totalorder %s210, 1
          %s215 = sphi [#allocation2], [#allocation2]
          %s216 = sphi %s3, %s3
        $region47: #{elr_loss_forward.1} parent=43 // loop_header_branch
          %213 = sbr.rel (%p211) target = $region51
        $region48: #{elr_loss_forward.1} parent=43 // loop_body
          %v217 = vld [vmem:[%s215] sm:$0xff]
          %218 = vst [vmem:[%s216] sm:$0xff] %v217
          %v219 = vld [vmem:[%s215 + $0x8] sm:$0xff]
          %220 = vst [vmem:[%s216 + $0x8] sm:$0xff] %v219
          %v221 = vld [vmem:[%s215 + $0x10] sm:$0xff]
          %222 = vst [vmem:[%s216 + $0x10] sm:$0xff] %v221
          %v223 = vld [vmem:[%s215 + $0x18] sm:$0xff]
          %224 = vst [vmem:[%s216 + $0x18] sm:$0xff] %v223
          %v225 = vld [vmem:[%s215 + $0x20] sm:$0xff]
          %226 = vst [vmem:[%s216 + $0x20] sm:$0xff] %v225
          %v227 = vld [vmem:[%s215 + $0x28] sm:$0xff]
          %228 = vst [vmem:[%s216 + $0x28] sm:$0xff] %v227
          %v229 = vld [vmem:[%s215 + $0x30] sm:$0xff]
          %230 = vst [vmem:[%s216 + $0x30] sm:$0xff] %v229
          %v231 = vld [vmem:[%s215 + $0x38] sm:$0xff]
          %232 = vst [vmem:[%s216 + $0x38] sm:$0xff] %v231
        $region49: #{elr_loss_forward.1} parent=43 // loop_footer
          %s214 = sadd.s32 1, %s210
        $region50: #{elr_loss_forward.1} parent=43 // loop_footer_branch
          %209 = sbr.rel target = $region46
        $region51: #{elr_loss_forward.1} parent=43 // loop_exit
          _
      $region44: #{elr_loss_forward.1} parent=39 // pred_fallthru
        _
      // Predicated region
      $region52: #{elr_loss_forward.1} parent=39 // pred_check
        _
      $region53: #{elr_loss_forward.1} parent=39 // pred_check_branch
        %234 = sbr.rel target = $region55
      $region54: #{elr_loss_forward.1} parent=39 // pred_region
        _
      $region55: #{elr_loss_forward.1} parent=39 // pred_fallthru
        _
      // Predicated region
      $region56: #{elr_loss_forward.1} parent=39 // pred_check
        _
      $region57: #{elr_loss_forward.1} parent=39 // pred_check_branch
        %237 = sbr.rel (0) target = $region59
      $region58: #{elr_loss_forward.1} parent=39 // pred_region
        %238 = vsyncadd [#allocation4], 1024
      $region59: #{elr_loss_forward.1} parent=39 // pred_fallthru
        _
      %s239 = smul.u32 64, 1
      %s240 = sshll.u32 %s239, 4
      %241 = dma.done [#allocation4], %s240
    $region40: #{elr_loss_forward.1} parent=1 // pred_fallthru
      _
    // Predicated region
    $region60: #{elr_loss_forward.1} parent=1 // pred_check
      _
    $region61: #{elr_loss_forward.1} parent=1 // pred_check_branch
      %243 = sbr.rel (0) target = $region63
    $region62: #{elr_loss_forward.1} parent=1 // pred_region
      %245 = vsyncadd [#allocation6], 0
      %s247 = sshll.u32 [#allocation8], 4
      %s248 = int_to_ptr.vmem [resolvable:$true] %s247
      %s249 = sshll.u32 %s4, 4
      %s250 = int_to_ptr.hbm [resolvable:$true] %s249
      %252 = dma.vmem_to_hbm [thread:$0]  %s248, 16, %s250, [#allocation6]
    $region63: #{elr_loss_forward.1} parent=1 // pred_fallthru
      _
    // Predicated region
    $region64: #{elr_loss_forward.1} parent=1 // pred_check
      _
    $region65: #{elr_loss_forward.1} parent=1 // pred_check_branch
      %254 = sbr.rel (0) target = $region67
    $region66: #{elr_loss_forward.1} parent=1 // pred_region
      %256 = dma.done [#allocation6], 16
    $region67: #{elr_loss_forward.1} parent=1 // pred_fallthru
      _
    %257 = vsyncpa [#allocation6], 1
    %258 = vsyncpa [#allocation7], 1
  %259 = vsyncmov [#allocation4]
  %s260 = vpop.sfrf %259
  %p261 = scmp.eq.s32.totalorder %s260, 0
  %p262 = pneg %p261
  %264 = shalt.err (%p262)

</llo_original>
